<compile_context>
chip_gen: v7x
topology: tpu7x:2x2x1
jax: 0.10.0
libtpu: 0.0.40
codegen_flags: <defaults>
</compile_context>

<pallas_src>
import functools

import jax
import jax.numpy as jnp
import numpy as np
from jax.experimental import pallas as pl
from jax.experimental.pallas import tpu as pltpu

_LANE = 128


def _round_up(x, m):
    return ((x + m - 1) // m) * m


def _fused_ensemble_kernel(x_ref, w1_ref, b1_ref, w2_ref, b2_ref, o_ref):
    """Single-shot kernel: all targets x all folds in two matmuls.

    x_ref  : [B, D_in]
    w1_ref : [D_in, K1]      K1 = sum_t (F * H_t), lane-padded to 128
    b1_ref : [1, K1]
    w2_ref : [K1, D_pad]     block-diagonal over targets, pre-scaled by 1/F;
                             contraction over K1 sums over folds
    b2_ref : [1, D_pad]      fold-averaged biases (zero in padded lanes)
    o_ref  : [B, D_pad]      lane-dense output; wrapper slices real columns
    """
    h = jnp.dot(x_ref[...], w1_ref[...], preferred_element_type=jnp.float32)
    h = jnp.maximum(h + b1_ref[...], 0.0)
    o_ref[...] = (
        jnp.dot(h, w2_ref[...], preferred_element_type=jnp.float32) + b2_ref[...]
    )


def pack_ensemble_params(params):
    """One-time host-side (numpy) packing of per-target fold-stacked MLP params.

    params[target] = (w1 [F, D_in, H], b1 [F, H], w2 [F, H, D_out], b2 [F, D_out])

    Returns (w1_big, b1_big, w2_big, b2_big) as device arrays plus the per-target
    column slices of the fused (padded) output.
    """
    w1_blocks, b1_blocks, w2_blocks, b2_blocks = [], [], [], []
    slices = {}
    col = 0
    n_folds = None
    for tname, (w1, b1, w2, b2) in params.items():
        w1 = np.asarray(w1, np.float32)
        b1 = np.asarray(b1, np.float32)
        w2 = np.asarray(w2, np.float32)
        b2 = np.asarray(b2, np.float32)
        F, d_in, h_dim = w1.shape
        d_out = w2.shape[-1]
        if n_folds is None:
            n_folds = F
        assert F == n_folds, "all targets must share the same fold count"
        # [F, D_in, H] -> [D_in, F*H]   (lane index = f*H + h)
        w1_blocks.append(np.transpose(w1, (1, 0, 2)).reshape(d_in, F * h_dim))
        b1_blocks.append(b1.reshape(F * h_dim))
        # [F, H, D_out] -> [F*H, D_out]; 1/F folded in -> contraction = fold mean
        w2_blocks.append(w2.reshape(F * h_dim, d_out) / np.float32(F))
        # fold-mean head bias, added once at the end
        b2_blocks.append(b2.mean(axis=0))
        slices[tname] = (col, col + d_out)
        col += d_out

    w1_big = np.concatenate(w1_blocks, axis=1)            # [D_in, K1]
    b1_big = np.concatenate(b1_blocks, axis=0)[None, :]   # [1, K1]
    k1 = w1_big.shape[1]
    k1_pad = _round_up(k1, _LANE)
    d_total = col
    d_pad = _round_up(d_total, _LANE)

    if k1_pad != k1:  # lane-pad the trunk (padded h is relu(0)=0, never used by W2)
        w1_big = np.pad(w1_big, ((0, 0), (0, k1_pad - k1)))
        b1_big = np.pad(b1_big, ((0, 0), (0, k1_pad - k1)))

    # Block-diagonal head, lane-padded output width -> unmasked vector stores.
    w2_big = np.zeros((k1_pad, d_pad), np.float32)
    row = 0
    for blk, (lo, hi) in zip(w2_blocks, slices.values()):
        w2_big[row:row + blk.shape[0], lo:hi] = blk
        row += blk.shape[0]
    b2_big = np.zeros((1, d_pad), np.float32)
    b2_big[0, :d_total] = np.concatenate(b2_blocks, axis=0)

    packed = tuple(jnp.asarray(a) for a in (w1_big, b1_big, w2_big, b2_big))
    return packed, slices


def make_model_shell_forward(packed, slices):
    """Build a jitted forward mirroring ModelShell.forward (dict of fold-means)."""
    w1_big, b1_big, w2_big, b2_big = packed
    d_in, k1 = w1_big.shape
    d_pad = w2_big.shape[1]
    # Freeze slices as a static tuple so it can live inside the jitted closure.
    slice_items = tuple(slices.items())

    def _forward(x, w1, b1, w2, b2):
        b = x.shape[0]
        flops = 2 * b * d_in * k1 + 2 * b * k1 * d_pad
        bytes_accessed = 4 * (
            x.size + w1.size + b1.size + w2.size + b2.size + b * d_pad
        )
        fused = pl.pallas_call(
            _fused_ensemble_kernel,
            out_shape=jax.ShapeDtypeStruct((b, d_pad), jnp.float32),
            # Grid-less call: whole arrays resident in VMEM, no pipeline machinery.
            in_specs=[pl.BlockSpec(memory_space=pltpu.MemorySpace.VMEM)] * 5,
            out_specs=pl.BlockSpec(memory_space=pltpu.MemorySpace.VMEM),
            cost_estimate=pl.CostEstimate(
                flops=flops, transcendentals=0, bytes_accessed=bytes_accessed
            ),
        )(x, w1, b1, w2, b2)
        # Cheap (fused-under-jit) slicing back into the per-target dict.
        return {t: fused[:, lo:hi] for t, (lo, hi) in slice_items}

    jitted = jax.jit(_forward)

    def forward(x):
        return jitted(x, w1_big, b1_big, w2_big, b2_big)

    return forward


def _reference_forward(x, params):
    """Pure-JAX reference replicating the PyTorch semantics (stack + mean over folds)."""
    out = {}
    for tname, (w1, b1, w2, b2) in params.items():
        preds = []
        for f in range(w1.shape[0]):
            h = jnp.maximum(x @ w1[f] + b1[f], 0.0)
            preds.append(h @ w2[f] + b2[f])
        out[tname] = jnp.stack(preds, axis=-1).mean(axis=-1)
    return out


if __name__ == "__main__":
    # Small, shape-consistent synthetic setup.
    B, D_in, H = 8, 32, 64
    D_out = {"target_a": 16, "target_b": 8}
    F = 3  # number of fold models in the ensemble
    # TODO(synk): the real fold-model class comes from model_config.torch; any
    # per-fold op that mixes hidden units (layernorm/softmax over H) would break
    # the lane-folded packing and needs a per-fold grid axis instead.

    key = jax.random.PRNGKey(0)
    k_x, k_p = jax.random.split(key)
    x = jax.random.normal(k_x, (B, D_in), dtype=jnp.float32)

    params = {}
    for i, (tname, dout) in enumerate(D_out.items()):
        kw1, kb1, kw2, kb2 = jax.random.split(jax.random.fold_in(k_p, i), 4)
        w1 = jax.random.normal(kw1, (F, D_in, H), dtype=jnp.float32) * 0.1
        b1 = jax.random.normal(kb1, (F, H), dtype=jnp.float32) * 0.1
        w2 = jax.random.normal(kw2, (F, H, dout), dtype=jnp.float32) * 0.1
        b2 = jax.random.normal(kb2, (F, dout), dtype=jnp.float32) * 0.1
        params[tname] = (w1, b1, w2, b2)

    # One-time packing + jitted forward construction (hoisted off the call path).
    packed, slices = pack_ensemble_params(params)
    forward = make_model_shell_forward(packed, slices)

    out = forward(x)
    out = jax.tree_util.tree_map(jax.block_until_ready, out)

    ref = _reference_forward(x, params)
    for tname in D_out:
        assert out[tname].shape == ref[tname].shape
        np.testing.assert_allclose(
            np.asarray(out[tname]), np.asarray(ref[tname]), rtol=2e-5, atol=2e-5
        )

    print("KERNEL_OK")
</pallas_src>

<mosaic_0001>
module attributes {stable_mosaic.version = 11 : i64} {
  func.func @_fused_ensemble_kernel(%arg0: memref<8x32xf32, #tpu.memory_space<vmem>>, %arg1: memref<32x384xf32, #tpu.memory_space<vmem>>, %arg2: memref<1x384xf32, #tpu.memory_space<vmem>>, %arg3: memref<384x128xf32, #tpu.memory_space<vmem>>, %arg4: memref<1x128xf32, #tpu.memory_space<vmem>>, %arg5: memref<8x128xf32, #tpu.memory_space<vmem>>) attributes {dimension_semantics = [], scalar_prefetch = 0 : i64, scratch_operands = 0 : i64, tpu.core_type = #tpu.core_type<tc>} {
    %c0 = arith.constant 0 : index
    %c0_0 = arith.constant 0 : index
    %0 = vector.load %arg0[%c0, %c0_0] : memref<8x32xf32, #tpu.memory_space<vmem>>, vector<8x32xf32>
    %c0_1 = arith.constant 0 : index
    %c0_2 = arith.constant 0 : index
    %1 = vector.load %arg1[%c0_1, %c0_2] : memref<32x384xf32, #tpu.memory_space<vmem>>, vector<32x384xf32>
    %cst = arith.constant dense<0.000000e+00> : vector<8x384xf32>
    %2 = tpu.matmul %0, %1, %cst {dimension_numbers = #tpu.dot_dimension_numbers<[1], [0], [0], [1], [0, 0, 1, 1], [], []>} : vector<8x32xf32>, vector<32x384xf32>, vector<8x384xf32> -> vector<8x384xf32>
    %c0_3 = arith.constant 0 : index
    %c0_4 = arith.constant 0 : index
    %3 = vector.load %arg2[%c0_3, %c0_4] : memref<1x384xf32, #tpu.memory_space<vmem>>, vector<1x384xf32>
    %4 = vector.broadcast %3 : vector<1x384xf32> to vector<8x384xf32>
    %5 = arith.addf %2, %4 : vector<8x384xf32>
    %cst_5 = arith.constant 0.000000e+00 : f32
    %6 = vector.broadcast %cst_5 : f32 to vector<8x384xf32>
    %7 = arith.maximumf %5, %6 : vector<8x384xf32>
    %c0_6 = arith.constant 0 : index
    %c0_7 = arith.constant 0 : index
    %8 = vector.load %arg3[%c0_6, %c0_7] : memref<384x128xf32, #tpu.memory_space<vmem>>, vector<384x128xf32>
    %cst_8 = arith.constant dense<0.000000e+00> : vector<8x128xf32>
    %9 = tpu.matmul %7, %8, %cst_8 {dimension_numbers = #tpu.dot_dimension_numbers<[1], [0], [0], [1], [0, 0, 1, 1], [], []>} : vector<8x384xf32>, vector<384x128xf32>, vector<8x128xf32> -> vector<8x128xf32>
    %c0_9 = arith.constant 0 : index
    %c0_10 = arith.constant 0 : index
    %10 = vector.load %arg4[%c0_9, %c0_10] : memref<1x128xf32, #tpu.memory_space<vmem>>, vector<1x128xf32>
    %11 = vector.broadcast %10 : vector<1x128xf32> to vector<8x128xf32>
    %12 = arith.addf %9, %11 : vector<8x128xf32>
    %c0_11 = arith.constant 0 : index
    %c0_12 = arith.constant 0 : index
    %13 = vector.load %arg5[%c0_11, %c0_12] : memref<8x128xf32, #tpu.memory_space<vmem>>, vector<8x128xf32>
    tpu.vector_store %arg5[%c0_11, %c0_12], %12 {strides = array<i32>} : memref<8x128xf32, #tpu.memory_space<vmem>>, vector<8x128xf32>,
    return
  }
}

</mosaic_0001>

<llo_original>
// kernel: _forward.1
$region0: #{_forward.1}
  #allocation0 [shape = 'u32[]', space=smem, size = 0x4, offset = 0x4, fixed_abs, tag = 'smem constant byte address 0x4 - core index']
  #allocation1 [shape = 'u32[144,128]{1,0:T(1,128)}', space=vmem, size = 0x12000, scoped, tag = 'internal scratch']
  %s0 = inlined_call_operand.hbm [shape: f32[8,32], index: 0, kind: input, shape index: {}]
  %s1 = inlined_call_operand.hbm [shape: f32[32,384], index: 1, kind: input, shape index: {}]
  %s2 = inlined_call_operand.vmem [shape: f32[1,384], index: 2, kind: input, shape index: {}]
  %s3 = inlined_call_operand.hbm [shape: f32[384,128], index: 3, kind: input, shape index: {}]
  %s4 = inlined_call_operand.vmem [shape: f32[1,128], index: 4, kind: input, shape index: {}]
  %s5 = inlined_call_operand.vmem [shape: f32[8,128], index: 5, kind: output, shape index: {}]
  %s6 = sld [smem:[#allocation0]]
  $region42: #{_forward.1} parent=0
    _
  %s8 = ssub.s32 1, %s6
  %s9 = scalar_select 0, %s8, %s6
  $region1: #{_forward.1} parent=0
    #allocation2 [shape = 'u8[4096]{0}', space=vmem, size = 0x1000, scoped, tag = 'input window, operand 0, single buffered']
    #allocation3 [shape = 's32[1]{0}', space=sflag, size = 0x4, scoped, tag = 'scoped memory for _forward.1']
    #allocation4 [shape = 'u8[49152]{0}', space=vmem, size = 0xc000, scoped, tag = 'input window, operand 1, single buffered']
    #allocation5 [shape = 's32[1]{0}', space=sflag, size = 0x4, scoped, tag = 'scoped memory for _forward.1']
    #allocation6 [shape = 'u8[196608]{0}', space=vmem, size = 0x30000, scoped, tag = 'input window, operand 3, single buffered']
    %10 = vsyncpa [#allocation3], 0
    %11 = vsyncpa [#allocation5], 0
    // Predicated region
    $region2: #{_forward.1} parent=1 // pred_check
      _
    $region3: #{_forward.1} parent=1 // pred_check_branch
      %13 = sbr.rel (0) target = $region5
    $region4: #{_forward.1} parent=1 // pred_region
      %s15 = ssub.s32 128, 128
      %16 = vsyncadd [#allocation3], %s15
      %s18 = sshll.u32 [#allocation2], 4
      %s19 = int_to_ptr.vmem [resolvable:$true] %s18
      %21 = dma.hbm_to_vmem [thread:$0]  %s0, 128, %s19, [#allocation3]
    $region5: #{_forward.1} parent=1 // pred_fallthru
      _
    // Predicated region
    $region6: #{_forward.1} parent=1 // pred_check
      _
    $region7: #{_forward.1} parent=1 // pred_check_branch
      %23 = sbr.rel (0) target = $region9
    $region8: #{_forward.1} parent=1 // pred_region
      %s25 = ssub.s32 1536, 1536
      %26 = vsyncadd [#allocation5], %s25
      %s27 = sshll.u32 [#allocation4], 4
      %s28 = int_to_ptr.vmem [resolvable:$true] %s27
      %33 = dma.hbm_to_vmem [thread:$0]  %s1, 1536, %s28, [#allocation5], 384, 384, 24
    $region9: #{_forward.1} parent=1 // pred_fallthru
      _
    // Predicated region
    $region10: #{_forward.1} parent=1 // pred_check
      _
    $region11: #{_forward.1} parent=1 // pred_check_branch
      %35 = sbr.rel (0) target = $region13
    $region12: #{_forward.1} parent=1 // pred_region
      _
    $region13: #{_forward.1} parent=1 // pred_fallthru
      _
    // Predicated region
    $region14: #{_forward.1} parent=1 // pred_check
      _
    $region15: #{_forward.1} parent=1 // pred_check_branch
      %37 = sbr.rel (0) target = $region17
    $region16: #{_forward.1} parent=1 // pred_region
      %s39 = ssub.s32 6144, 6144
      %40 = vsyncadd [#allocation5], %s39
      %s41 = sshll.u32 [#allocation6], 4
      %s42 = int_to_ptr.vmem [resolvable:$true] %s41
      %47 = dma.hbm_to_vmem [thread:$0]  %s3, 6144, %s42, [#allocation5], 128, 128, 8
    $region17: #{_forward.1} parent=1 // pred_fallthru
      _
    // Predicated region
    $region18: #{_forward.1} parent=1 // pred_check
      _
    $region19: #{_forward.1} parent=1 // pred_check_branch
      %49 = sbr.rel (0) target = $region21
    $region20: #{_forward.1} parent=1 // pred_region
      _
    $region21: #{_forward.1} parent=1 // pred_fallthru
      _
    // Predicated region
    $region22: #{_forward.1} parent=1 // pred_check
      _
    $region23: #{_forward.1} parent=1 // pred_check_branch
      %51 = sbr.rel (0) target = $region25
    $region24: #{_forward.1} parent=1 // pred_region
      %52 = dma.done [#allocation3], 128
    $region25: #{_forward.1} parent=1 // pred_fallthru
      _
    // Predicated region
    $region26: #{_forward.1} parent=1 // pred_check
      _
    $region27: #{_forward.1} parent=1 // pred_check_branch
      %54 = sbr.rel (0) target = $region29
    $region28: #{_forward.1} parent=1 // pred_region
      %55 = dma.done [#allocation5], 1536
    $region29: #{_forward.1} parent=1 // pred_fallthru
      _
    // Predicated region
    $region30: #{_forward.1} parent=1 // pred_check
      _
    $region31: #{_forward.1} parent=1 // pred_check_branch
      %57 = sbr.rel (0) target = $region33
    $region32: #{_forward.1} parent=1 // pred_region
      %58 = dma.done [#allocation5], 6144
    $region33: #{_forward.1} parent=1 // pred_fallthru
      _
    %v59 = vld [vmem:[#allocation2] sm:$0xff]
    %v60 = vld [vmem:[#allocation4] sm:$0xff]
    %v61 = vld [vmem:[#allocation4 + $0x8] sm:$0xff]
    %v62 = vld [vmem:[#allocation4 + $0x10] sm:$0xff]
    %v63 = vld [vmem:[#allocation4 + $0x18] sm:$0xff]
    %v64 = vld [vmem:[#allocation4 + $0x20] sm:$0xff]
    %v65 = vld [vmem:[#allocation4 + $0x28] sm:$0xff]
    %v66 = vld [vmem:[#allocation4 + $0x30] sm:$0xff]
    %v67 = vld [vmem:[#allocation4 + $0x38] sm:$0xff]
    %v68 = vld [vmem:[#allocation4 + $0x40] sm:$0xff]
    %v69 = vld [vmem:[#allocation4 + $0x48] sm:$0xff]
    %v70 = vld [vmem:[#allocation4 + $0x50] sm:$0xff]
    %v71 = vld [vmem:[#allocation4 + $0x58] sm:$0xff]
    %v72 = vld [vmem:[%s2] sm:$0x7]
    %v74 = vlaneseq
    %v75 = vshrl.u32 %v74, 7
    %v76 = vsub.s32 0, %v75
    %v77 = vrot.slane %v72, %v76
    %v78 = vlaneseq
    %v79 = vshrl.u32 %v78, 7
    %v80 = vsub.s32 1, %v79
    %v81 = vrot.slane %v72, %v80
    %v82 = vlaneseq
    %v83 = vshrl.u32 %v82, 7
    %v84 = vsub.s32 2, %v83
    %v85 = vrot.slane %v72, %v84
    %vm89 = vcmask 261120
    %v91 = vsel %vm89, %v59, 0
    %93 = vmatprep.subr.mxu0 %v61
    %94 = vmatpush1.msra.mxu0 %v60
    %95 = vmatprep.subr.mxu0 %v64
    %96 = vmatpush1.msra.mxu0 %v63
    %97 = vmatprep.subr.mxu0 %v67
    %98 = vmatpush1.msra.mxu0 %v66
    %99 = vmatprep.subr.mxu0 %v70
    %100 = vmatpush1.msra.mxu0 %v69
    %101 = vmatprep.subr.mxu0 0.0
    %102 = vmatpush1.msra.mxu0 0.0
    %103 = vmatprep.subr.mxu0 0.0
    %104 = vmatpush1.msra.mxu0 0.0
    %105 = vmatprep.subr.mxu0 0.0
    %106 = vmatpush1.msra.mxu0 0.0
    %107 = vmatprep.subr.mxu0 0.0
    %108 = vmatpush1.msra.mxu0 0.0
    %109 = vmatprep.subr.mxu0 0.0
    %110 = vmatpush1.msra.mxu0 0.0
    %111 = vmatprep.subr.mxu0 0.0
    %112 = vmatpush1.msra.mxu0 0.0
    %113 = vmatprep.subr.mxu0 0.0
    %114 = vmatpush1.msra.mxu0 0.0
    %115 = vmatprep.subr.mxu0 0.0
    %116 = vmatpush1.msra.mxu0 0.0
    %117 = vmatprep.subr.mxu0 0.0
    %118 = vmatpush1.msra.mxu0 0.0
    %119 = vmatprep.subr.mxu0 0.0
    %120 = vmatpush1.msra.mxu0 0.0
    %121 = vmatprep.subr.mxu0 0.0
    %122 = vmatpush1.msra.mxu0 0.0
    %123 = vmatprep.subr.mxu0 0.0
    %124 = vmatpush1.msra.mxu0 0.0
    %125 = vmatprep.subr.mxu0 0.0
    %126 = vmatpush1.msra.mxu0 0.0
    %127 = vmatprep.subr.mxu0 0.0
    %128 = vmatpush1.msra.mxu0 0.0
    %129 = vmatprep.subr.mxu0 0.0
    %130 = vmatpush1.msra.mxu0 0.0
    %131 = vmatprep.subr.mxu0 0.0
    %132 = vmatpush1.msra.mxu0 0.0
    %133 = vmatprep.subr.mxu0 0.0
    %134 = vmatpush1.msra.mxu0 0.0
    %135 = vmatprep.subr.mxu0 0.0
    %136 = vmatpush1.msra.mxu0 0.0
    %137 = vmatprep.subr.mxu0 0.0
    %138 = vmatpush1.msra.mxu0 0.0
    %139 = vmatprep.subr.mxu0 0.0
    %140 = vmatpush1.msra.mxu0 0.0
    %141 = vmatprep.subr.mxu0 0.0
    %142 = vmatpush1.msra.mxu0 0.0
    %143 = vmatprep.subr.mxu0 0.0
    %144 = vmatpush1.msra.mxu0 0.0
    %145 = vmatprep.subr.mxu0 0.0
    %146 = vmatpush1.msra.mxu0 0.0
    %147 = vmatprep.subr.mxu0 0.0
    %148 = vmatpush1.msra.mxu0 0.0
    %149 = vmatprep.subr.mxu0 0.0
    %150 = vmatpush1.msra.mxu0 0.0
    %151 = vmatprep.subr.mxu0 0.0
    %152 = vmatpush1.msra.mxu0 0.0
    %153 = vmatprep.subr.mxu0 0.0
    %154 = vmatpush1.msra.mxu0 0.0
    %155 = vmatprep.subr.mxu0 0.0
    %156 = vmatpush1.msra.mxu0 0.0
    %157 = vmatprep.mubr.f32.mxu0 0.0
    %158 = vmatmul.mubr.f32.gmra.mrb[0].mxu0 %v91
    %v159 = vpop.f32.mrb[0].mxu0
    %v160 = vadd.f32 %v77, %v159
    %v161 = vpop.f32.mrb[0].mxu0
    %v162 = vadd.f32 %v81, %v161
    %163 = vdwg.mxu0
    %164 = vmatprep.subr.mxu0 0.0
    %165 = vmatpush1.msra.mxu0 %v62
    %166 = vmatprep.subr.mxu0 0.0
    %167 = vmatpush1.msra.mxu0 %v65
    %168 = vmatprep.subr.mxu0 0.0
    %169 = vmatpush1.msra.mxu0 %v68
    %170 = vmatprep.subr.mxu0 0.0
    %171 = vmatpush1.msra.mxu0 %v71
    %172 = vmatprep.subr.mxu0 0.0
    %173 = vmatpush1.msra.mxu0 0.0
    %174 = vmatprep.subr.mxu0 0.0
    %175 = vmatpush1.msra.mxu0 0.0
    %176 = vmatprep.subr.mxu0 0.0
    %177 = vmatpush1.msra.mxu0 0.0
    %178 = vmatprep.subr.mxu0 0.0
    %179 = vmatpush1.msra.mxu0 0.0
    %180 = vmatprep.subr.mxu0 0.0
    %181 = vmatpush1.msra.mxu0 0.0
    %182 = vmatprep.subr.mxu0 0.0
    %183 = vmatpush1.msra.mxu0 0.0
    %184 = vmatprep.subr.mxu0 0.0
    %185 = vmatpush1.msra.mxu0 0.0
    %186 = vmatprep.subr.mxu0 0.0
    %187 = vmatpush1.msra.mxu0 0.0
    %188 = vmatprep.subr.mxu0 0.0
    %189 = vmatpush1.msra.mxu0 0.0
    %190 = vmatprep.subr.mxu0 0.0
    %191 = vmatpush1.msra.mxu0 0.0
    %192 = vmatprep.subr.mxu0 0.0
    %193 = vmatpush1.msra.mxu0 0.0
    %194 = vmatprep.subr.mxu0 0.0
    %195 = vmatpush1.msra.mxu0 0.0
    %196 = vmatprep.subr.mxu0 0.0
    %197 = vmatpush1.msra.mxu0 0.0
    %198 = vmatprep.subr.mxu0 0.0
    %199 = vmatpush1.msra.mxu0 0.0
    %200 = vmatprep.subr.mxu0 0.0
    %201 = vmatpush1.msra.mxu0 0.0
    %202 = vmatprep.subr.mxu0 0.0
    %203 = vmatpush1.msra.mxu0 0.0
    %204 = vmatprep.subr.mxu0 0.0
    %205 = vmatpush1.msra.mxu0 0.0
    %206 = vmatprep.subr.mxu0 0.0
    %207 = vmatpush1.msra.mxu0 0.0
    %208 = vmatprep.subr.mxu0 0.0
    %209 = vmatpush1.msra.mxu0 0.0
    %210 = vmatprep.subr.mxu0 0.0
    %211 = vmatpush1.msra.mxu0 0.0
    %212 = vmatprep.subr.mxu0 0.0
    %213 = vmatpush1.msra.mxu0 0.0
    %214 = vmatprep.subr.mxu0 0.0
    %215 = vmatpush1.msra.mxu0 0.0
    %216 = vmatprep.subr.mxu0 0.0
    %217 = vmatpush1.msra.mxu0 0.0
    %218 = vmatprep.subr.mxu0 0.0
    %219 = vmatpush1.msra.mxu0 0.0
    %220 = vmatprep.subr.mxu0 0.0
    %221 = vmatpush1.msra.mxu0 0.0
    %222 = vmatprep.subr.mxu0 0.0
    %223 = vmatpush1.msra.mxu0 0.0
    %224 = vmatprep.subr.mxu0 0.0
    %225 = vmatpush1.msra.mxu0 0.0
    %226 = vmatprep.subr.mxu0 0.0
    %227 = vmatpush1.msra.mxu0 0.0
    %228 = vmatprep.mubr.f32.mxu0 0.0
    %229 = vmatmul.mubr.f32.gmra.mrb[0].mxu0 %v91
    %v230 = vpop.f32.mrb[0].mxu0
    %v231 = vadd.f32 %v85, %v230
    %v232 = vpop.f32.mrb[0].mxu0
    %233 = vdwg.mxu0
    %v234 = vmax.f32 %v160, 0.0
    %v235 = vmax.f32 %v162, 0.0
    %v236 = vmax.f32 %v231, 0.0
    %v237 = vld [vmem:[#allocation6] sm:$0xff]
    %v238 = vld [vmem:[#allocation6 + $0x8] sm:$0xff]
    %v239 = vld [vmem:[#allocation6 + $0x10] sm:$0xff]
    %v240 = vld [vmem:[#allocation6 + $0x18] sm:$0xff]
    %v241 = vld [vmem:[#allocation6 + $0x20] sm:$0xff]
    %v242 = vld [vmem:[#allocation6 + $0x28] sm:$0xff]
    %v243 = vld [vmem:[#allocation6 + $0x30] sm:$0xff]
    %v244 = vld [vmem:[#allocation6 + $0x38] sm:$0xff]
    %v245 = vld [vmem:[#allocation6 + $0x40] sm:$0xff]
    %v246 = vld [vmem:[#allocation6 + $0x48] sm:$0xff]
    %v247 = vld [vmem:[#allocation6 + $0x50] sm:$0xff]
    %v248 = vld [vmem:[#allocation6 + $0x58] sm:$0xff]
    %v249 = vld [vmem:[#allocation6 + $0x60] sm:$0xff]
    %v250 = vld [vmem:[#allocation6 + $0x68] sm:$0xff]
    %v251 = vld [vmem:[#allocation6 + $0x70] sm:$0xff]
    %v252 = vld [vmem:[#allocation6 + $0x78] sm:$0xff]
    %v253 = vld [vmem:[#allocation6 + $0x80] sm:$0xff]
    %v254 = vld [vmem:[#allocation6 + $0x88] sm:$0xff]
    %v255 = vld [vmem:[#allocation6 + $0x90] sm:$0xff]
    %v256 = vld [vmem:[#allocation6 + $0x98] sm:$0xff]
    %v257 = vld [vmem:[#allocation6 + $0xa0] sm:$0xff]
    %v258 = vld [vmem:[#allocation6 + $0xa8] sm:$0xff]
    %v259 = vld [vmem:[#allocation6 + $0xb0] sm:$0xff]
    %v260 = vld [vmem:[#allocation6 + $0xb8] sm:$0xff]
    %v261 = vld [vmem:[#allocation6 + $0xc0] sm:$0xff]
    %v262 = vld [vmem:[#allocation6 + $0xc8] sm:$0xff]
    %v263 = vld [vmem:[#allocation6 + $0xd0] sm:$0xff]
    %v264 = vld [vmem:[#allocation6 + $0xd8] sm:$0xff]
    %v265 = vld [vmem:[#allocation6 + $0xe0] sm:$0xff]
    %v266 = vld [vmem:[#allocation6 + $0xe8] sm:$0xff]
    %v267 = vld [vmem:[#allocation6 + $0xf0] sm:$0xff]
    %v268 = vld [vmem:[#allocation6 + $0xf8] sm:$0xff]
    %v269 = vld [vmem:[#allocation6 + $0x100] sm:$0xff]
    %v270 = vld [vmem:[#allocation6 + $0x108] sm:$0xff]
    %v271 = vld [vmem:[#allocation6 + $0x110] sm:$0xff]
    %v272 = vld [vmem:[#allocation6 + $0x118] sm:$0xff]
    %v273 = vld [vmem:[#allocation6 + $0x120] sm:$0xff]
    %v274 = vld [vmem:[#allocation6 + $0x128] sm:$0xff]
    %v275 = vld [vmem:[#allocation6 + $0x130] sm:$0xff]
    %v276 = vld [vmem:[#allocation6 + $0x138] sm:$0xff]
    %v277 = vld [vmem:[#allocation6 + $0x140] sm:$0xff]
    %v278 = vld [vmem:[#allocation6 + $0x148] sm:$0xff]
    %v279 = vld [vmem:[#allocation6 + $0x150] sm:$0xff]
    %v280 = vld [vmem:[#allocation6 + $0x158] sm:$0xff]
    %v281 = vld [vmem:[#allocation6 + $0x160] sm:$0xff]
    %v282 = vld [vmem:[#allocation6 + $0x168] sm:$0xff]
    %v283 = vld [vmem:[#allocation6 + $0x170] sm:$0xff]
    %v284 = vld [vmem:[#allocation6 + $0x178] sm:$0xff]
    %v285 = vld [vmem:[%s4] sm:$0x1]
    %v287 = vlaneseq
    %v288 = vshrl.u32 %v287, 7
    %v289 = vsub.s32 0, %v288
    %v290 = vrot.slane %v285, %v289
    %292 = vmatprep.subr.mxu0 0.0
    %293 = vmatpush1.msra.mxu0 %v237
    %294 = vmatprep.subr.mxu0 0.0
    %295 = vmatpush1.msra.mxu0 %v238
    %296 = vmatprep.subr.mxu0 0.0
    %297 = vmatpush1.msra.mxu0 %v239
    %298 = vmatprep.subr.mxu0 0.0
    %299 = vmatpush1.msra.mxu0 %v240
    %300 = vmatprep.subr.mxu0 0.0
    %301 = vmatpush1.msra.mxu0 %v241
    %302 = vmatprep.subr.mxu0 0.0
    %303 = vmatpush1.msra.mxu0 %v242
    %304 = vmatprep.subr.mxu0 0.0
    %305 = vmatpush1.msra.mxu0 %v243
    %306 = vmatprep.subr.mxu0 0.0
    %307 = vmatpush1.msra.mxu0 %v244
    %308 = vmatprep.subr.mxu0 0.0
    %309 = vmatpush1.msra.mxu0 %v245
    %310 = vmatprep.subr.mxu0 0.0
    %311 = vmatpush1.msra.mxu0 %v246
    %312 = vmatprep.subr.mxu0 0.0
    %313 = vmatpush1.msra.mxu0 %v247
    %314 = vmatprep.subr.mxu0 0.0
    %315 = vmatpush1.msra.mxu0 %v248
    %316 = vmatprep.subr.mxu0 0.0
    %317 = vmatpush1.msra.mxu0 %v249
    %318 = vmatprep.subr.mxu0 0.0
    %319 = vmatpush1.msra.mxu0 %v250
    %320 = vmatprep.subr.mxu0 0.0
    %321 = vmatpush1.msra.mxu0 %v251
    %322 = vmatprep.subr.mxu0 0.0
    %323 = vmatpush1.msra.mxu0 %v252
    %324 = vmatprep.subr.mxu0 0.0
    %325 = vmatpush1.msra.mxu0 %v253
    %326 = vmatprep.subr.mxu0 0.0
    %327 = vmatpush1.msra.mxu0 %v254
    %328 = vmatprep.subr.mxu0 0.0
    %329 = vmatpush1.msra.mxu0 %v255
    %330 = vmatprep.subr.mxu0 0.0
    %331 = vmatpush1.msra.mxu0 %v256
    %332 = vmatprep.subr.mxu0 0.0
    %333 = vmatpush1.msra.mxu0 %v257
    %334 = vmatprep.subr.mxu0 0.0
    %335 = vmatpush1.msra.mxu0 %v258
    %336 = vmatprep.subr.mxu0 0.0
    %337 = vmatpush1.msra.mxu0 %v259
    %338 = vmatprep.subr.mxu0 0.0
    %339 = vmatpush1.msra.mxu0 %v260
    %340 = vmatprep.subr.mxu0 0.0
    %341 = vmatpush1.msra.mxu0 %v261
    %342 = vmatprep.subr.mxu0 0.0
    %343 = vmatpush1.msra.mxu0 %v262
    %344 = vmatprep.subr.mxu0 0.0
    %345 = vmatpush1.msra.mxu0 %v263
    %346 = vmatprep.subr.mxu0 0.0
    %347 = vmatpush1.msra.mxu0 %v264
    %348 = vmatprep.subr.mxu0 0.0
    %349 = vmatpush1.msra.mxu0 %v265
    %350 = vmatprep.subr.mxu0 0.0
    %351 = vmatpush1.msra.mxu0 %v266
    %352 = vmatprep.subr.mxu0 0.0
    %353 = vmatpush1.msra.mxu0 %v267
    %354 = vmatprep.subr.mxu0 0.0
    %355 = vmatpush1.msra.mxu0 %v268
    %356 = vmatprep.mubr.f32.mxu0 %v235
    %357 = vmatmul.mubr.f32.gmra.mrb[0].mxu0 %v234
    %v358 = vpop.f32.mrb[0].mxu0
    %v359 = vadd.f32 %v290, %v358
    %v360 = vpop.f32.mrb[0].mxu0
    %361 = vdwg.mxu0
    %362 = vmatprep.subr.mxu0 0.0
    %363 = vmatpush1.msra.mxu0 %v269
    %364 = vmatprep.subr.mxu0 0.0
    %365 = vmatpush1.msra.mxu0 %v270
    %366 = vmatprep.subr.mxu0 0.0
    %367 = vmatpush1.msra.mxu0 %v271
    %368 = vmatprep.subr.mxu0 0.0
    %369 = vmatpush1.msra.mxu0 %v272
    %370 = vmatprep.subr.mxu0 0.0
    %371 = vmatpush1.msra.mxu0 %v273
    %372 = vmatprep.subr.mxu0 0.0
    %373 = vmatpush1.msra.mxu0 %v274
    %374 = vmatprep.subr.mxu0 0.0
    %375 = vmatpush1.msra.mxu0 %v275
    %376 = vmatprep.subr.mxu0 0.0
    %377 = vmatpush1.msra.mxu0 %v276
    %378 = vmatprep.subr.mxu0 0.0
    %379 = vmatpush1.msra.mxu0 %v277
    %380 = vmatprep.subr.mxu0 0.0
    %381 = vmatpush1.msra.mxu0 %v278
    %382 = vmatprep.subr.mxu0 0.0
    %383 = vmatpush1.msra.mxu0 %v279
    %384 = vmatprep.subr.mxu0 0.0
    %385 = vmatpush1.msra.mxu0 %v280
    %386 = vmatprep.subr.mxu0 0.0
    %387 = vmatpush1.msra.mxu0 %v281
    %388 = vmatprep.subr.mxu0 0.0
    %389 = vmatpush1.msra.mxu0 %v282
    %390 = vmatprep.subr.mxu0 0.0
    %391 = vmatpush1.msra.mxu0 %v283
    %392 = vmatprep.subr.mxu0 0.0
    %393 = vmatpush1.msra.mxu0 %v284
    %394 = vmatprep.subr.mxu0 0.0
    %395 = vmatpush1.msra.mxu0 0.0
    %396 = vmatprep.subr.mxu0 0.0
    %397 = vmatpush1.msra.mxu0 0.0
    %398 = vmatprep.subr.mxu0 0.0
    %399 = vmatpush1.msra.mxu0 0.0
    %400 = vmatprep.subr.mxu0 0.0
    %401 = vmatpush1.msra.mxu0 0.0
    %402 = vmatprep.subr.mxu0 0.0
    %403 = vmatpush1.msra.mxu0 0.0
    %404 = vmatprep.subr.mxu0 0.0
    %405 = vmatpush1.msra.mxu0 0.0
    %406 = vmatprep.subr.mxu0 0.0
    %407 = vmatpush1.msra.mxu0 0.0
    %408 = vmatprep.subr.mxu0 0.0
    %409 = vmatpush1.msra.mxu0 0.0
    %410 = vmatprep.subr.mxu0 0.0
    %411 = vmatpush1.msra.mxu0 0.0
    %412 = vmatprep.subr.mxu0 0.0
    %413 = vmatpush1.msra.mxu0 0.0
    %414 = vmatprep.subr.mxu0 0.0
    %415 = vmatpush1.msra.mxu0 0.0
    %416 = vmatprep.subr.mxu0 0.0
    %417 = vmatpush1.msra.mxu0 0.0
    %418 = vmatprep.subr.mxu0 0.0
    %419 = vmatpush1.msra.mxu0 0.0
    %420 = vmatprep.subr.mxu0 0.0
    %421 = vmatpush1.msra.mxu0 0.0
    %422 = vmatprep.subr.mxu0 0.0
    %423 = vmatpush1.msra.mxu0 0.0
    %424 = vmatprep.subr.mxu0 0.0
    %425 = vmatpush1.msra.mxu0 0.0
    %426 = vmatprep.mubr.f32.mxu0 0.0
    %427 = vmatmul.mubr.f32.gmra.mrb[0].mxu0 %v236
    %v428 = vpop.f32.mrb[0].mxu0
    %v429 = vadd.f32 %v359, %v428
    %v430 = vpop.f32.mrb[0].mxu0
    %431 = vdwg.mxu0
    %432 = vst [vmem:[%s5] sm:$0xff] %v429
    // Predicated region
    $region34: #{_forward.1} parent=1 // pred_check
      _
    $region35: #{_forward.1} parent=1 // pred_check_branch
      %434 = sbr.rel (0) target = $region37
    $region36: #{_forward.1} parent=1 // pred_region
      _
    $region37: #{_forward.1} parent=1 // pred_fallthru
      _
    // Predicated region
    $region38: #{_forward.1} parent=1 // pred_check
      _
    $region39: #{_forward.1} parent=1 // pred_check_branch
      %436 = sbr.rel (0) target = $region41
    $region40: #{_forward.1} parent=1 // pred_region
      _
    $region41: #{_forward.1} parent=1 // pred_fallthru
      _
    %437 = vsyncpa [#allocation3], 1
    %438 = vsyncpa [#allocation5], 1

</llo_original>
